<compile_context>
chip_gen: v7x
topology: tpu7x:2x2x1
jax: 0.10.0
libtpu: 0.0.40
codegen_flags: <defaults>
</compile_context>

<pallas_src>
import jax
import jax.numpy as jnp
from jax.experimental import pallas as pl
from jax.experimental.pallas import tpu as pltpu

EPS = 1e-6


def make_frame_kernel(order, dipole, n_atoms, n_gather, n_batch, f_tile):
    def kernel(pts_ref, trip_ref, mask_ref, out_ref):
        # Loop-invariant sublane iota used to build the one-hot gather matrix.
        iota_a = jax.lax.broadcasted_iota(jnp.int32, (n_atoms, f_tile), 0)

        @pl.loop(0, n_batch)
        def _(i):
            pts_t = pts_ref[i]                                    # (3, A)
            trip = jnp.clip(trip_ref[i], 0, n_atoms - 1)          # (n_gather, tf)
            m = mask_ref[i]                                       # (1, tf)

            def point(k):                                         # -> 3 x (1, tf)
                # One-hot gather on the MXU: g[c, f] = points[trip[k, f], c].
                onehot = (iota_a == trip[k:k + 1, :]).astype(jnp.float32)
                g = jnp.dot(pts_t, onehot,
                            preferred_element_type=jnp.float32)   # (3, tf)
                return (g[0:1, :], g[1:2, :], g[2:3, :])

            def vsub(a, b):
                return tuple(ac - bc for ac, bc in zip(a, b))

            def cross(a, b):
                ax, ay, az = a
                bx, by, bz = b
                return (ay * bz - az * by, az * bx - ax * bz, ax * by - ay * bx)

            def normalize(v, unit_row):
                vx, vy, vz = v
                # Full-width (1, tf) row norm: no cross-lane reduce needed.
                inv = 1.0 / (jnp.sqrt(vx * vx + vy * vy + vz * vz) + EPS)
                comps = [vx, vy, vz]
                comps[unit_row] = comps[unit_row] + EPS
                return tuple(c * inv for c in comps)

            p0 = point(0)
            p1 = point(1)
            p2 = point(2)

            delta_10 = vsub(p1, p0)
            delta_20 = vsub(p2, p0)
            if order in ('2', '3'):
                delta_10, delta_20 = delta_20, delta_10
            centers = p0

            zaxis = normalize(delta_10, 2)
            yaxis = normalize(cross(zaxis, delta_20), 1)
            xaxis = normalize(cross(yaxis, zaxis), 0)
            if order == '3':
                xaxis, yaxis, zaxis = zaxis, xaxis, yaxis

            vecs = [centers, xaxis, yaxis, zaxis]
            if dipole:
                vecs.append(normalize(vsub(point(3), p0), 2))

            # Single fused lane-dense store: rows ordered (vec, xyz).
            rows = [c for v in vecs for c in v]                   # n_vec*3 x (1, tf)
            out_ref[i] = jnp.concatenate(rows, axis=0) * m        # (n_vec*3, tf)

    return kernel


def _largest_divisor_leq(n, target):
    d = max(1, min(target, n))
    while n % d:
        d -= 1
    return d


def _choose_frame_tile(F, target=512):
    """Largest multiple-of-128 divisor of F that is <= target, else full F."""
    if F <= target:
        return F
    tf = (target // 128) * 128
    while tf >= 128:
        if F % tf == 0:
            return tf
        tf -= 128
    return F


def frame_builder(points, triplets, mask=None, order='1', dipole=False,
                  batch_block=8):
    """Pallas equivalent of FrameBuilder.forward((points, triplets), mask)."""
    points = points.astype(jnp.float32)
    triplets = triplets.astype(jnp.int32)
    N, A, _ = points.shape
    _, F_, P = triplets.shape
    n_gather = 4 if dipole else 3
    assert P >= n_gather, f"triplets must carry >= {n_gather} indices per frame"
    n_vec = 5 if dipole else 4

    if mask is None:
        mask_arr = jnp.ones((N, 1, F_), jnp.float32)
    else:
        mask_arr = mask.astype(jnp.float32).reshape(N, 1, F_)

    # Layout plumbing on the (tiny) inputs so the kernel works SoA / lane dense:
    #   points   -> (N, 3, A)         xyz on sublanes, atoms on lanes
    #   triplets -> (N, n_gather, F)  gather-point index on sublanes, frames on lanes
    points_t = jnp.transpose(points, (0, 2, 1))
    trip_t = jnp.transpose(triplets[:, :, :n_gather], (0, 2, 1))

    nb = _largest_divisor_leq(N, batch_block)
    tf = _choose_frame_tile(F_)
    kernel = make_frame_kernel(order, dipole, A, n_gather, nb, tf)

    out = pl.pallas_call(
        kernel,
        out_shape=jax.ShapeDtypeStruct((N, n_vec * 3, F_), jnp.float32),
        grid=(N // nb, F_ // tf),
        in_specs=[
            pl.BlockSpec((nb, 3, A), lambda b, j: (b, 0, 0)),
            pl.BlockSpec((nb, n_gather, tf), lambda b, j: (b, 0, j)),
            pl.BlockSpec((nb, 1, tf), lambda b, j: (b, 0, j)),
        ],
        out_specs=pl.BlockSpec((nb, n_vec * 3, tf), lambda b, j: (b, 0, j)),
        compiler_params=pltpu.CompilerParams(
            dimension_semantics=("parallel", "parallel")),
    )(points_t, trip_t, mask_arr)

    # (N, n_vec*3, F) -> (N, F, n_vec, 3): cheap xyz un-transpose of the compact
    # lane-dense kernel output (matches torch.stack([...], dim=-2)).
    return jnp.transpose(out, (0, 2, 1)).reshape(N, F_, n_vec, 3)


def frame_builder_ref(points, triplets, mask=None, order='1', dipole=False):
    """Pure-JAX reference mirroring the PyTorch forward."""
    points = points.astype(jnp.float32)
    A = points.shape[1]
    t = jnp.clip(triplets, 0, A - 1)

    def gather(k):
        return jnp.take_along_axis(points, t[:, :, k:k + 1], axis=1)

    p0, p1, p2 = gather(0), gather(1), gather(2)
    d10, d20 = p1 - p0, p2 - p0
    if order in ('2', '3'):
        d10, d20 = d20, d10
    centers = p0

    xunit = jnp.array([[[1.0, 0.0, 0.0]]], jnp.float32)
    yunit = jnp.array([[[0.0, 1.0, 0.0]]], jnp.float32)
    zunit = jnp.array([[[0.0, 0.0, 1.0]]], jnp.float32)

    def normalize(v, unit):
        return (v + EPS * unit) / (
            jnp.sqrt(jnp.sum(v * v, axis=-1, keepdims=True)) + EPS)

    zaxis = normalize(d10, zunit)
    yaxis = normalize(jnp.cross(zaxis, d20), yunit)
    xaxis = normalize(jnp.cross(yaxis, zaxis), xunit)
    if order == '3':
        xaxis, yaxis, zaxis = zaxis, xaxis, yaxis

    vecs = [centers, xaxis, yaxis, zaxis]
    if dipole:
        vecs.append(normalize(gather(3) - p0, zunit))
    frames = jnp.stack(vecs, axis=-2)
    if mask is not None:
        frames = frames * mask.astype(jnp.float32)[:, :, None, None]
    return frames


if __name__ == "__main__":
    key = jax.random.PRNGKey(0)
    k1, k2, k3, k4 = jax.random.split(key, 4)

    N, A, F_ = 2, 16, 8
    points = jax.random.normal(k1, (N, A, 3), dtype=jnp.float32)

    # Distinct atom indices per frame (keeps the cross products well
    # conditioned); one row carries out-of-range indices whose clamped values
    # stay distinct, exercising the clamp path.
    order_idx = jnp.argsort(jax.random.uniform(k2, (N, F_, A)), axis=-1)
    order_idx = order_idx.astype(jnp.int32)
    triplets = order_idx[:, :, :3]
    triplets = triplets.at[0, 0, :].set(jnp.array([-2, 5, A + 3], jnp.int32))

    mask = (jax.random.uniform(k3, (N, F_)) > 0.3).astype(jnp.float32)

    frames = frame_builder(points, triplets, mask=mask, order='1', dipole=False)
    frames = jax.block_until_ready(frames)
    ref = frame_builder_ref(points, triplets, mask=mask, order='1', dipole=False)
    assert frames.shape == (N, F_, 4, 3), frames.shape
    assert jnp.allclose(frames, ref, atol=1e-5, rtol=1e-5), (
        float(jnp.max(jnp.abs(frames - ref))))

    # Dipole + alternative ordering path.
    trip4 = order_idx[:, :, :4]
    trip4 = trip4.at[1, 2, :].set(jnp.array([-1, 3, 7, A + 2], jnp.int32))
    frames_d = frame_builder(points, trip4, mask=mask, order='3', dipole=True)
    frames_d = jax.block_until_ready(frames_d)
    ref_d = frame_builder_ref(points, trip4, mask=mask, order='3', dipole=True)
    assert frames_d.shape == (N, F_, 5, 3), frames_d.shape
    assert jnp.allclose(frames_d, ref_d, atol=1e-5, rtol=1e-5), (
        float(jnp.max(jnp.abs(frames_d - ref_d))))

    # Larger frame count to exercise the lane-dense F-tiling path (tf=128).
    F_big = 640
    order_big = jnp.argsort(jax.random.uniform(k4, (N, F_big, A)), axis=-1)
    trip_big = order_big.astype(jnp.int32)[:, :, :3]
    frames_b = frame_builder(points, trip_big, mask=None, order='2', dipole=False)
    frames_b = jax.block_until_ready(frames_b)
    ref_b = frame_builder_ref(points, trip_big, mask=None, order='2', dipole=False)
    assert frames_b.shape == (N, F_big, 4, 3), frames_b.shape
    assert jnp.allclose(frames_b, ref_b, atol=1e-5, rtol=1e-5), (
        float(jnp.max(jnp.abs(frames_b - ref_b))))

    print("KERNEL_OK")
</pallas_src>

<mosaic_0001>
module attributes {stable_mosaic.version = 11 : i64} {
  func.func @kernel(%arg0: i32, %arg1: i32, %arg2: memref<2x3x16xf32, #tpu.memory_space<vmem>>, %arg3: memref<2x3x8xi32, #tpu.memory_space<vmem>>, %arg4: memref<2x1x8xf32, #tpu.memory_space<vmem>>, %arg5: memref<2x12x8xf32, #tpu.memory_space<vmem>>) attributes {dimension_semantics = [#tpu.dimension_semantics<parallel>, #tpu.dimension_semantics<parallel>], iteration_bounds = array<i64: 1, 1>, scalar_prefetch = 0 : i64, scratch_operands = 0 : i64, tpu.core_type = #tpu.core_type<tc>, window_params = [{transform_indices = @transform_0, window_bounds = array<i64: 2, 3, 16>}, {transform_indices = @transform_1, window_bounds = array<i64: 2, 3, 8>}, {transform_indices = @transform_2, window_bounds = array<i64: 2, 1, 8>}, {transform_indices = @transform_3, window_bounds = array<i64: 2, 12, 8>}]} {
    %0 = tpu.iota {dimensions = array<i32: 0>} : vector<16x8xi32>
    %c0_i32 = arith.constant 0 : i32
    %c2_i32 = arith.constant 2 : i32
    %1 = arith.addi %c0_i32, %c2_i32 : i32
    %c1_i32 = arith.constant 1 : i32
    scf.for %arg6 = %c0_i32 to %1 step %c1_i32  : i32 {
      %c1_i32_1 = arith.constant 1 : i32
      %2 = arith.muli %arg6, %c1_i32_1 : i32
      %c0_i32_2 = arith.constant 0 : i32
      %3 = arith.addi %c0_i32_2, %2 : i32
      %4 = arith.index_cast %3 : i32 to index
      %c0 = arith.constant 0 : index
      %c0_3 = arith.constant 0 : index
      %5 = vector.load %arg2[%4, %c0, %c0_3] : memref<2x3x16xf32, #tpu.memory_space<vmem>>, vector<1x3x16xf32>
      %6 = vector.shape_cast %5 : vector<1x3x16xf32> to vector<3x16xf32>
      %7 = arith.index_cast %3 : i32 to index
      %c0_4 = arith.constant 0 : index
      %c0_5 = arith.constant 0 : index
      %8 = vector.load %arg3[%7, %c0_4, %c0_5] : memref<2x3x8xi32, #tpu.memory_space<vmem>>, vector<1x3x8xi32>
      %9 = vector.shape_cast %8 : vector<1x3x8xi32> to vector<3x8xi32>
      %c0_i32_6 = arith.constant 0 : i32
      %c15_i32 = arith.constant 15 : i32
      %10 = vector.broadcast %c0_i32_6 : i32 to vector<3x8xi32>
      %11 = arith.maxsi %10, %9 : vector<3x8xi32>
      %12 = vector.broadcast %c15_i32 : i32 to vector<3x8xi32>
      %13 = arith.minsi %12, %11 : vector<3x8xi32>
      %14 = arith.index_cast %3 : i32 to index
      %c0_7 = arith.constant 0 : index
      %c0_8 = arith.constant 0 : index
      %15 = vector.load %arg4[%14, %c0_7, %c0_8] : memref<2x1x8xf32, #tpu.memory_space<vmem>>, vector<1x1x8xf32>
      %16 = vector.shape_cast %15 : vector<1x1x8xf32> to vector<1x8xf32>
      %17 = vector.extract_strided_slice %13 {offsets = [0, 0], sizes = [1, 8], strides = [1, 1]} : vector<3x8xi32> to vector<1x8xi32>
      %18 = vector.broadcast %17 : vector<1x8xi32> to vector<16x8xi32>
      %19 = arith.cmpi eq, %0, %18 : vector<16x8xi32>
      %20 = arith.extui %19 : vector<16x8xi1> to vector<16x8xi32>
      %21 = arith.sitofp %20 : vector<16x8xi32> to vector<16x8xf32>
      %cst = arith.constant dense<0.000000e+00> : vector<3x8xf32>
      %22 = tpu.matmul %6, %21, %cst {dimension_numbers = #tpu.dot_dimension_numbers<[1], [0], [0], [1], [0, 0, 1, 1], [], []>} : vector<3x16xf32>, vector<16x8xf32>, vector<3x8xf32> -> vector<3x8xf32>
      %23 = vector.extract_strided_slice %22 {offsets = [0, 0], sizes = [1, 8], strides = [1, 1]} : vector<3x8xf32> to vector<1x8xf32>
      %24 = vector.extract_strided_slice %22 {offsets = [1, 0], sizes = [1, 8], strides = [1, 1]} : vector<3x8xf32> to vector<1x8xf32>
      %25 = vector.extract_strided_slice %22 {offsets = [2, 0], sizes = [1, 8], strides = [1, 1]} : vector<3x8xf32> to vector<1x8xf32>
      %26 = vector.extract_strided_slice %13 {offsets = [1, 0], sizes = [1, 8], strides = [1, 1]} : vector<3x8xi32> to vector<1x8xi32>
      %27 = vector.broadcast %26 : vector<1x8xi32> to vector<16x8xi32>
      %28 = arith.cmpi eq, %0, %27 : vector<16x8xi32>
      %29 = arith.extui %28 : vector<16x8xi1> to vector<16x8xi32>
      %30 = arith.sitofp %29 : vector<16x8xi32> to vector<16x8xf32>
      %cst_9 = arith.constant dense<0.000000e+00> : vector<3x8xf32>
      %31 = tpu.matmul %6, %30, %cst_9 {dimension_numbers = #tpu.dot_dimension_numbers<[1], [0], [0], [1], [0, 0, 1, 1], [], []>} : vector<3x16xf32>, vector<16x8xf32>, vector<3x8xf32> -> vector<3x8xf32>
      %32 = vector.extract_strided_slice %31 {offsets = [0, 0], sizes = [1, 8], strides = [1, 1]} : vector<3x8xf32> to vector<1x8xf32>
      %33 = vector.extract_strided_slice %31 {offsets = [1, 0], sizes = [1, 8], strides = [1, 1]} : vector<3x8xf32> to vector<1x8xf32>
      %34 = vector.extract_strided_slice %31 {offsets = [2, 0], sizes = [1, 8], strides = [1, 1]} : vector<3x8xf32> to vector<1x8xf32>
      %35 = vector.extract_strided_slice %13 {offsets = [2, 0], sizes = [1, 8], strides = [1, 1]} : vector<3x8xi32> to vector<1x8xi32>
      %36 = vector.broadcast %35 : vector<1x8xi32> to vector<16x8xi32>
      %37 = arith.cmpi eq, %0, %36 : vector<16x8xi32>
      %38 = arith.extui %37 : vector<16x8xi1> to vector<16x8xi32>
      %39 = arith.sitofp %38 : vector<16x8xi32> to vector<16x8xf32>
      %cst_10 = arith.constant dense<0.000000e+00> : vector<3x8xf32>
      %40 = tpu.matmul %6, %39, %cst_10 {dimension_numbers = #tpu.dot_dimension_numbers<[1], [0], [0], [1], [0, 0, 1, 1], [], []>} : vector<3x16xf32>, vector<16x8xf32>, vector<3x8xf32> -> vector<3x8xf32>
      %41 = vector.extract_strided_slice %40 {offsets = [0, 0], sizes = [1, 8], strides = [1, 1]} : vector<3x8xf32> to vector<1x8xf32>
      %42 = vector.extract_strided_slice %40 {offsets = [1, 0], sizes = [1, 8], strides = [1, 1]} : vector<3x8xf32> to vector<1x8xf32>
      %43 = vector.extract_strided_slice %40 {offsets = [2, 0], sizes = [1, 8], strides = [1, 1]} : vector<3x8xf32> to vector<1x8xf32>
      %44 = arith.subf %32, %23 : vector<1x8xf32>
      %45 = arith.subf %33, %24 : vector<1x8xf32>
      %46 = arith.subf %34, %25 : vector<1x8xf32>
      %47 = arith.subf %41, %23 : vector<1x8xf32>
      %48 = arith.subf %42, %24 : vector<1x8xf32>
      %49 = arith.subf %43, %25 : vector<1x8xf32>
      %50 = arith.mulf %44, %44 : vector<1x8xf32>
      %51 = arith.mulf %45, %45 : vector<1x8xf32>
      %52 = arith.addf %50, %51 : vector<1x8xf32>
      %53 = arith.mulf %46, %46 : vector<1x8xf32>
      %54 = arith.addf %52, %53 : vector<1x8xf32>
      %55 = math.sqrt %54 : vector<1x8xf32>
      %cst_11 = arith.constant 9.99999997E-7 : f32
      %56 = vector.broadcast %cst_11 : f32 to vector<1x8xf32>
      %57 = arith.addf %55, %56 : vector<1x8xf32>
      %cst_12 = arith.constant 1.000000e+00 : f32
      %58 = vector.broadcast %cst_12 : f32 to vector<1x8xf32>
      %59 = arith.divf %58, %57 : vector<1x8xf32>
      %cst_13 = arith.constant 9.99999997E-7 : f32
      %60 = vector.broadcast %cst_13 : f32 to vector<1x8xf32>
      %61 = arith.addf %46, %60 : vector<1x8xf32>
      %62 = arith.mulf %44, %59 : vector<1x8xf32>
      %63 = arith.mulf %45, %59 : vector<1x8xf32>
      %64 = arith.mulf %61, %59 : vector<1x8xf32>
      %65 = arith.mulf %63, %49 : vector<1x8xf32>
      %66 = arith.mulf %64, %48 : vector<1x8xf32>
      %67 = arith.subf %65, %66 : vector<1x8xf32>
      %68 = arith.mulf %64, %47 : vector<1x8xf32>
      %69 = arith.mulf %62, %49 : vector<1x8xf32>
      %70 = arith.subf %68, %69 : vector<1x8xf32>
      %71 = arith.mulf %62, %48 : vector<1x8xf32>
      %72 = arith.mulf %63, %47 : vector<1x8xf32>
      %73 = arith.subf %71, %72 : vector<1x8xf32>
      %74 = arith.mulf %67, %67 : vector<1x8xf32>
      %75 = arith.mulf %70, %70 : vector<1x8xf32>
      %76 = arith.addf %74, %75 : vector<1x8xf32>
      %77 = arith.mulf %73, %73 : vector<1x8xf32>
      %78 = arith.addf %76, %77 : vector<1x8xf32>
      %79 = math.sqrt %78 : vector<1x8xf32>
      %cst_14 = arith.constant 9.99999997E-7 : f32
      %80 = vector.broadcast %cst_14 : f32 to vector<1x8xf32>
      %81 = arith.addf %79, %80 : vector<1x8xf32>
      %cst_15 = arith.constant 1.000000e+00 : f32
      %82 = vector.broadcast %cst_15 : f32 to vector<1x8xf32>
      %83 = arith.divf %82, %81 : vector<1x8xf32>
      %cst_16 = arith.constant 9.99999997E-7 : f32
      %84 = vector.broadcast %cst_16 : f32 to vector<1x8xf32>
      %85 = arith.addf %70, %84 : vector<1x8xf32>
      %86 = arith.mulf %67, %83 : vector<1x8xf32>
      %87 = arith.mulf %85, %83 : vector<1x8xf32>
      %88 = arith.mulf %73, %83 : vector<1x8xf32>
      %89 = arith.mulf %87, %64 : vector<1x8xf32>
      %90 = arith.mulf %88, %63 : vector<1x8xf32>
      %91 = arith.subf %89, %90 : vector<1x8xf32>
      %92 = arith.mulf %88, %62 : vector<1x8xf32>
      %93 = arith.mulf %86, %64 : vector<1x8xf32>
      %94 = arith.subf %92, %93 : vector<1x8xf32>
      %95 = arith.mulf %86, %63 : vector<1x8xf32>
      %96 = arith.mulf %87, %62 : vector<1x8xf32>
      %97 = arith.subf %95, %96 : vector<1x8xf32>
      %98 = arith.mulf %91, %91 : vector<1x8xf32>
      %99 = arith.mulf %94, %94 : vector<1x8xf32>
      %100 = arith.addf %98, %99 : vector<1x8xf32>
      %101 = arith.mulf %97, %97 : vector<1x8xf32>
      %102 = arith.addf %100, %101 : vector<1x8xf32>
      %103 = math.sqrt %102 : vector<1x8xf32>
      %cst_17 = arith.constant 9.99999997E-7 : f32
      %104 = vector.broadcast %cst_17 : f32 to vector<1x8xf32>
      %105 = arith.addf %103, %104 : vector<1x8xf32>
      %cst_18 = arith.constant 1.000000e+00 : f32
      %106 = vector.broadcast %cst_18 : f32 to vector<1x8xf32>
      %107 = arith.divf %106, %105 : vector<1x8xf32>
      %cst_19 = arith.constant 9.99999997E-7 : f32
      %108 = vector.broadcast %cst_19 : f32 to vector<1x8xf32>
      %109 = arith.addf %91, %108 : vector<1x8xf32>
      %110 = arith.mulf %109, %107 : vector<1x8xf32>
      %111 = arith.mulf %94, %107 : vector<1x8xf32>
      %112 = arith.mulf %97, %107 : vector<1x8xf32>
      %113 = tpu.concatenate %23, %24, %25, %110, %111, %112, %86, %87, %88, %62, %63, %64 in 0 : vector<1x8xf32>, vector<1x8xf32>, vector<1x8xf32>, vector<1x8xf32>, vector<1x8xf32>, vector<1x8xf32>, vector<1x8xf32>, vector<1x8xf32>, vector<1x8xf32>, vector<1x8xf32>, vector<1x8xf32>, vector<1x8xf32> -> vector<12x8xf32>
      %114 = vector.broadcast %16 : vector<1x8xf32> to vector<12x8xf32>
      %115 = arith.mulf %113, %114 : vector<12x8xf32>
      %116 = arith.index_cast %3 : i32 to index
      %c0_20 = arith.constant 0 : index
      %c0_21 = arith.constant 0 : index
      %117 = vector.load %arg5[%116, %c0_20, %c0_21] : memref<2x12x8xf32, #tpu.memory_space<vmem>>, vector<1x12x8xf32>
      %118 = vector.shape_cast %117 : vector<1x12x8xf32> to vector<12x8xf32>
      %119 = vector.shape_cast %115 : vector<12x8xf32> to vector<1x12x8xf32>
      tpu.vector_store %arg5[%116, %c0_20, %c0_21], %119 {strides = array<i32>} : memref<2x12x8xf32, #tpu.memory_space<vmem>>, vector<1x12x8xf32>,
    }
    %c2_i32_0 = arith.constant 2 : i32
    return
  }
  func.func @transform_0(%arg0: i32, %arg1: i32) -> (i32, i32, i32) {
    %c0_i32 = arith.constant 0 : i32
    %c0_i32_0 = arith.constant 0 : i32
    %c0_i32_1 = arith.constant 0 : i32
    return %arg0, %c0_i32, %c0_i32_0 : i32, i32, i32
  }
  func.func @transform_1(%arg0: i32, %arg1: i32) -> (i32, i32, i32) {
    %c0_i32 = arith.constant 0 : i32
    %c0_i32_0 = arith.constant 0 : i32
    return %arg0, %c0_i32, %arg1 : i32, i32, i32
  }
  func.func @transform_2(%arg0: i32, %arg1: i32) -> (i32, i32, i32) {
    %c0_i32 = arith.constant 0 : i32
    %c0_i32_0 = arith.constant 0 : i32
    return %arg0, %c0_i32, %arg1 : i32, i32, i32
  }
  func.func @transform_3(%arg0: i32, %arg1: i32) -> (i32, i32, i32) {
    %c0_i32 = arith.constant 0 : i32
    %c0_i32_0 = arith.constant 0 : i32
    return %arg0, %c0_i32, %arg1 : i32, i32, i32
  }
}

</mosaic_0001>

<llo_original>
// kernel: tpu_custom_call.1
$region0: #{tpu_custom_call.1}
  #allocation0 [shape = 'u32[]', space=smem, size = 0x4, offset = 0x4, fixed_abs, tag = 'smem constant byte address 0x4 - core index']
  #allocation1 [shape = 'u32[144,128]{1,0:T(1,128)}', space=vmem, size = 0x12000, scoped, tag = 'internal scratch']
  %s0 = inlined_call_operand.vmem [shape: f32[2,3,16], index: 0, kind: input, shape index: {}]
  %s1 = inlined_call_operand.vmem [shape: s32[2,3,8], index: 1, kind: input, shape index: {}]
  %s2 = inlined_call_operand.vmem [shape: f32[2,1,8], index: 2, kind: input, shape index: {}]
  %s3 = inlined_call_operand.vmem [shape: f32[2,12,8], index: 3, kind: output, shape index: {}]
  %s4 = sld [smem:[#allocation0]]
  $region29: #{tpu_custom_call.1} parent=0
    _
  %s6 = ssub.s32 1, %s4
  %s7 = scalar_select 0, %s6, %s4
  // Predicated region
  $region2: #{tpu_custom_call.1} parent=0 // pred_check
    _
  $region3: #{tpu_custom_call.1} parent=0 // pred_check_branch
    %9 = sbr.rel (0) target = $region5
  $region4: #{tpu_custom_call.1} parent=0 // pred_region
    _
  $region5: #{tpu_custom_call.1} parent=0 // pred_fallthru
    _
  // Predicated region
  $region6: #{tpu_custom_call.1} parent=0 // pred_check
    _
  $region7: #{tpu_custom_call.1} parent=0 // pred_check_branch
    %11 = sbr.rel (0) target = $region9
  $region8: #{tpu_custom_call.1} parent=0 // pred_region
    _
  $region9: #{tpu_custom_call.1} parent=0 // pred_fallthru
    _
  // Predicated region
  $region10: #{tpu_custom_call.1} parent=0 // pred_check
    _
  $region11: #{tpu_custom_call.1} parent=0 // pred_check_branch
    %13 = sbr.rel (0) target = $region13
  $region12: #{tpu_custom_call.1} parent=0 // pred_region
    _
  $region13: #{tpu_custom_call.1} parent=0 // pred_fallthru
    _
  %v14 = vlaneseq
  %v15 = vshrl.u32 %v14, 7
  %v16 = vadd.s32 %v15, 8
  loop: start=0, step=1, limit=2
  $region14: #{tpu_custom_call.1} parent=0 // loop_pre_header
    _
  $region15: #{tpu_custom_call.1} parent=0 // loop_header
    %s18 = sphi 0, %s22
    %p19 = scmp.ge.s32.totalorder %s18, 2
  $region16: #{tpu_custom_call.1} parent=0 // loop_header_branch
    %21 = sbr.rel (%p19) target = $region20
  $region17: #{tpu_custom_call.1} parent=0 // loop_body
    %s23 = smul.u32 %s18, 4
    %s24 = scalar_lea.vmem %s0, %s23
    %v25 = vld [vmem:[%s24] sm:$0x7]
    %s26 = scalar_lea.vmem %s1, %s23
    %v27 = vld [vmem:[%s26] sm:$0x7]
    %vm28 = vcmp.gt.s32.totalorder %v27, 0
    %v29 = vsel %vm28, %v27, 0
    %vm30 = vcmp.lt.s32.totalorder %v29, 15
    %v31 = vsel %vm30, %v29, 15
    %s32 = scalar_lea.vmem %s2, %s18
    %v33 = vld [vmem:[%s32] sm:$0x1]
    %v34 = vlaneseq
    %v35 = vshrl.u32 %v34, 7
    %v36 = vsub.s32 0, %v35
    %v37 = vrot.slane %v31, %v36
    %vm38 = vcmp.eq.s32.totalorder %v15, %v37
    %vm39 = vcmp.eq.s32.totalorder %v16, %v37
    %v40 = vsel %vm38, 1, 0
    %v41 = vsel %vm39, 1, 0
    %v42 = vcvt.s32.f32 %v40
    %v43 = vcvt.s32.f32 %v41
    %vm44 = vcmask 130048
    %v46 = vsel %vm44, %v25, 0
    %48 = vmatprep.subr.mxu0 0.0
    %49 = vmatpush1.msra.mxu0 %v42
    %50 = vmatprep.subr.mxu0 0.0
    %51 = vmatpush1.msra.mxu0 %v43
    %52 = vmatprep.subr.mxu0 0.0
    %53 = vmatpush1.msra.mxu0 0.0
    %54 = vmatprep.subr.mxu0 0.0
    %55 = vmatpush1.msra.mxu0 0.0
    %56 = vmatprep.subr.mxu0 0.0
    %57 = vmatpush1.msra.mxu0 0.0
    %58 = vmatprep.subr.mxu0 0.0
    %59 = vmatpush1.msra.mxu0 0.0
    %60 = vmatprep.subr.mxu0 0.0
    %61 = vmatpush1.msra.mxu0 0.0
    %62 = vmatprep.subr.mxu0 0.0
    %63 = vmatpush1.msra.mxu0 0.0
    %64 = vmatprep.subr.mxu0 0.0
    %65 = vmatpush1.msra.mxu0 0.0
    %66 = vmatprep.subr.mxu0 0.0
    %67 = vmatpush1.msra.mxu0 0.0
    %68 = vmatprep.subr.mxu0 0.0
    %69 = vmatpush1.msra.mxu0 0.0
    %70 = vmatprep.subr.mxu0 0.0
    %71 = vmatpush1.msra.mxu0 0.0
    %72 = vmatprep.subr.mxu0 0.0
    %73 = vmatpush1.msra.mxu0 0.0
    %74 = vmatprep.subr.mxu0 0.0
    %75 = vmatpush1.msra.mxu0 0.0
    %76 = vmatprep.subr.mxu0 0.0
    %77 = vmatpush1.msra.mxu0 0.0
    %78 = vmatprep.subr.mxu0 0.0
    %79 = vmatpush1.msra.mxu0 0.0
    %80 = vmatprep.subr.mxu0 0.0
    %81 = vmatpush1.msra.mxu0 0.0
    %82 = vmatprep.subr.mxu0 0.0
    %83 = vmatpush1.msra.mxu0 0.0
    %84 = vmatprep.subr.mxu0 0.0
    %85 = vmatpush1.msra.mxu0 0.0
    %86 = vmatprep.subr.mxu0 0.0
    %87 = vmatpush1.msra.mxu0 0.0
    %88 = vmatprep.subr.mxu0 0.0
    %89 = vmatpush1.msra.mxu0 0.0
    %90 = vmatprep.subr.mxu0 0.0
    %91 = vmatpush1.msra.mxu0 0.0
    %92 = vmatprep.subr.mxu0 0.0
    %93 = vmatpush1.msra.mxu0 0.0
    %94 = vmatprep.subr.mxu0 0.0
    %95 = vmatpush1.msra.mxu0 0.0
    %96 = vmatprep.subr.mxu0 0.0
    %97 = vmatpush1.msra.mxu0 0.0
    %98 = vmatprep.subr.mxu0 0.0
    %99 = vmatpush1.msra.mxu0 0.0
    %100 = vmatprep.subr.mxu0 0.0
    %101 = vmatpush1.msra.mxu0 0.0
    %102 = vmatprep.subr.mxu0 0.0
    %103 = vmatpush1.msra.mxu0 0.0
    %104 = vmatprep.subr.mxu0 0.0
    %105 = vmatpush1.msra.mxu0 0.0
    %106 = vmatprep.subr.mxu0 0.0
    %107 = vmatpush1.msra.mxu0 0.0
    %108 = vmatprep.subr.mxu0 0.0
    %109 = vmatpush1.msra.mxu0 0.0
    %110 = vmatprep.subr.mxu0 0.0
    %111 = vmatpush1.msra.mxu0 0.0
    %112 = vmatprep.mubr.f32.mxu0 0.0
    %113 = vmatmul.mubr.f32.gmra.mrb[0].mxu0 %v46
    %v114 = vpop.f32.mrb[0].mxu0
    %v115 = vadd.f32 0.0, %v114
    %v116 = vpop.f32.mrb[0].mxu0
    %117 = vdwg.mxu0
    %v118 = vlaneseq
    %v119 = vshrl.u32 %v118, 7
    %v120 = vsub.s32 1, %v119
    %v121 = vrot.slane %v31, %v120
    %vm122 = vcmp.eq.s32.totalorder %v15, %v121
    %vm123 = vcmp.eq.s32.totalorder %v16, %v121
    %v124 = vsel %vm122, 1, 0
    %v125 = vsel %vm123, 1, 0
    %v126 = vcvt.s32.f32 %v124
    %v127 = vcvt.s32.f32 %v125
    %128 = vmatprep.subr.mxu0 0.0
    %129 = vmatpush1.msra.mxu0 %v126
    %130 = vmatprep.subr.mxu0 0.0
    %131 = vmatpush1.msra.mxu0 %v127
    %132 = vmatprep.subr.mxu0 0.0
    %133 = vmatpush1.msra.mxu0 0.0
    %134 = vmatprep.subr.mxu0 0.0
    %135 = vmatpush1.msra.mxu0 0.0
    %136 = vmatprep.subr.mxu0 0.0
    %137 = vmatpush1.msra.mxu0 0.0
    %138 = vmatprep.subr.mxu0 0.0
    %139 = vmatpush1.msra.mxu0 0.0
    %140 = vmatprep.subr.mxu0 0.0
    %141 = vmatpush1.msra.mxu0 0.0
    %142 = vmatprep.subr.mxu0 0.0
    %143 = vmatpush1.msra.mxu0 0.0
    %144 = vmatprep.subr.mxu0 0.0
    %145 = vmatpush1.msra.mxu0 0.0
    %146 = vmatprep.subr.mxu0 0.0
    %147 = vmatpush1.msra.mxu0 0.0
    %148 = vmatprep.subr.mxu0 0.0
    %149 = vmatpush1.msra.mxu0 0.0
    %150 = vmatprep.subr.mxu0 0.0
    %151 = vmatpush1.msra.mxu0 0.0
    %152 = vmatprep.subr.mxu0 0.0
    %153 = vmatpush1.msra.mxu0 0.0
    %154 = vmatprep.subr.mxu0 0.0
    %155 = vmatpush1.msra.mxu0 0.0
    %156 = vmatprep.subr.mxu0 0.0
    %157 = vmatpush1.msra.mxu0 0.0
    %158 = vmatprep.subr.mxu0 0.0
    %159 = vmatpush1.msra.mxu0 0.0
    %160 = vmatprep.subr.mxu0 0.0
    %161 = vmatpush1.msra.mxu0 0.0
    %162 = vmatprep.subr.mxu0 0.0
    %163 = vmatpush1.msra.mxu0 0.0
    %164 = vmatprep.subr.mxu0 0.0
    %165 = vmatpush1.msra.mxu0 0.0
    %166 = vmatprep.subr.mxu0 0.0
    %167 = vmatpush1.msra.mxu0 0.0
    %168 = vmatprep.subr.mxu0 0.0
    %169 = vmatpush1.msra.mxu0 0.0
    %170 = vmatprep.subr.mxu0 0.0
    %171 = vmatpush1.msra.mxu0 0.0
    %172 = vmatprep.subr.mxu0 0.0
    %173 = vmatpush1.msra.mxu0 0.0
    %174 = vmatprep.subr.mxu0 0.0
    %175 = vmatpush1.msra.mxu0 0.0
    %176 = vmatprep.subr.mxu0 0.0
    %177 = vmatpush1.msra.mxu0 0.0
    %178 = vmatprep.subr.mxu0 0.0
    %179 = vmatpush1.msra.mxu0 0.0
    %180 = vmatprep.subr.mxu0 0.0
    %181 = vmatpush1.msra.mxu0 0.0
    %182 = vmatprep.subr.mxu0 0.0
    %183 = vmatpush1.msra.mxu0 0.0
    %184 = vmatprep.subr.mxu0 0.0
    %185 = vmatpush1.msra.mxu0 0.0
    %186 = vmatprep.subr.mxu0 0.0
    %187 = vmatpush1.msra.mxu0 0.0
    %188 = vmatprep.subr.mxu0 0.0
    %189 = vmatpush1.msra.mxu0 0.0
    %190 = vmatprep.subr.mxu0 0.0
    %191 = vmatpush1.msra.mxu0 0.0
    %192 = vmatprep.mubr.f32.mxu0 0.0
    %193 = vmatmul.mubr.f32.gmra.mrb[0].mxu0 %v46
    %v194 = vpop.f32.mrb[0].mxu0
    %v195 = vadd.f32 0.0, %v194
    %v196 = vpop.f32.mrb[0].mxu0
    %197 = vdwg.mxu0
    %v198 = vlaneseq
    %v199 = vshrl.u32 %v198, 7
    %v200 = vsub.s32 2, %v199
    %v201 = vrot.slane %v31, %v200
    %vm202 = vcmp.eq.s32.totalorder %v15, %v201
    %vm203 = vcmp.eq.s32.totalorder %v16, %v201
    %v204 = vsel %vm202, 1, 0
    %v205 = vsel %vm203, 1, 0
    %v206 = vcvt.s32.f32 %v204
    %v207 = vcvt.s32.f32 %v205
    %208 = vmatprep.subr.mxu0 0.0
    %209 = vmatpush1.msra.mxu0 %v206
    %210 = vmatprep.subr.mxu0 0.0
    %211 = vmatpush1.msra.mxu0 %v207
    %212 = vmatprep.subr.mxu0 0.0
    %213 = vmatpush1.msra.mxu0 0.0
    %214 = vmatprep.subr.mxu0 0.0
    %215 = vmatpush1.msra.mxu0 0.0
    %216 = vmatprep.subr.mxu0 0.0
    %217 = vmatpush1.msra.mxu0 0.0
    %218 = vmatprep.subr.mxu0 0.0
    %219 = vmatpush1.msra.mxu0 0.0
    %220 = vmatprep.subr.mxu0 0.0
    %221 = vmatpush1.msra.mxu0 0.0
    %222 = vmatprep.subr.mxu0 0.0
    %223 = vmatpush1.msra.mxu0 0.0
    %224 = vmatprep.subr.mxu0 0.0
    %225 = vmatpush1.msra.mxu0 0.0
    %226 = vmatprep.subr.mxu0 0.0
    %227 = vmatpush1.msra.mxu0 0.0
    %228 = vmatprep.subr.mxu0 0.0
    %229 = vmatpush1.msra.mxu0 0.0
    %230 = vmatprep.subr.mxu0 0.0
    %231 = vmatpush1.msra.mxu0 0.0
    %232 = vmatprep.subr.mxu0 0.0
    %233 = vmatpush1.msra.mxu0 0.0
    %234 = vmatprep.subr.mxu0 0.0
    %235 = vmatpush1.msra.mxu0 0.0
    %236 = vmatprep.subr.mxu0 0.0
    %237 = vmatpush1.msra.mxu0 0.0
    %238 = vmatprep.subr.mxu0 0.0
    %239 = vmatpush1.msra.mxu0 0.0
    %240 = vmatprep.subr.mxu0 0.0
    %241 = vmatpush1.msra.mxu0 0.0
    %242 = vmatprep.subr.mxu0 0.0
    %243 = vmatpush1.msra.mxu0 0.0
    %244 = vmatprep.subr.mxu0 0.0
    %245 = vmatpush1.msra.mxu0 0.0
    %246 = vmatprep.subr.mxu0 0.0
    %247 = vmatpush1.msra.mxu0 0.0
    %248 = vmatprep.subr.mxu0 0.0
    %249 = vmatpush1.msra.mxu0 0.0
    %250 = vmatprep.subr.mxu0 0.0
    %251 = vmatpush1.msra.mxu0 0.0
    %252 = vmatprep.subr.mxu0 0.0
    %253 = vmatpush1.msra.mxu0 0.0
    %254 = vmatprep.subr.mxu0 0.0
    %255 = vmatpush1.msra.mxu0 0.0
    %256 = vmatprep.subr.mxu0 0.0
    %257 = vmatpush1.msra.mxu0 0.0
    %258 = vmatprep.subr.mxu0 0.0
    %259 = vmatpush1.msra.mxu0 0.0
    %260 = vmatprep.subr.mxu0 0.0
    %261 = vmatpush1.msra.mxu0 0.0
    %262 = vmatprep.subr.mxu0 0.0
    %263 = vmatpush1.msra.mxu0 0.0
    %264 = vmatprep.subr.mxu0 0.0
    %265 = vmatpush1.msra.mxu0 0.0
    %266 = vmatprep.subr.mxu0 0.0
    %267 = vmatpush1.msra.mxu0 0.0
    %268 = vmatprep.subr.mxu0 0.0
    %269 = vmatpush1.msra.mxu0 0.0
    %270 = vmatprep.subr.mxu0 0.0
    %271 = vmatpush1.msra.mxu0 0.0
    %272 = vmatprep.mubr.f32.mxu0 0.0
    %273 = vmatmul.mubr.f32.gmra.mrb[0].mxu0 %v46
    %v274 = vpop.f32.mrb[0].mxu0
    %v275 = vadd.f32 0.0, %v274
    %v276 = vpop.f32.mrb[0].mxu0
    %277 = vdwg.mxu0
    %v278 = vsub.f32 %v195, %v115
    %v279 = vsub.f32 %v275, %v115
    %v280 = vmul.f32 %v278, %v278
    %v282 = vrot.slane %v280, 1
    %v284 = vadd.f32 %v280, %v282
    %v285 = vrot.slane %v280, 2
    %v287 = vadd.f32 %v284, %v285
    %v288 = vrsqrt.pop %v287
    %v289 = vmul.f32 %v287, %v288
    %vm290 = vcmp.eq.f32.partialorder %v287, inf
    %v291 = vsel %vm290, %v287, %v289
    %vm292 = vcmp.eq.f32.partialorder %v287, 0.0
    %v293 = vand.u32 %v287, 2147483648
    %v294 = vsel %vm292, %v293, %v291
    %v295 = vadd.f32 %v294, 1e-06
    %v296 = vrcp.pop %v295
    %v297 = vmul.f32 1.0, %v296
    %v298 = vadd.f32 %v278, 1e-06
    %v299 = vmul.f32 %v278, %v297
    %v301 = vrot.slane %v297, 7
    %v303 = vmul.f32 %v278, %v301
    %v304 = vrot.slane %v297, 6
    %v306 = vmul.f32 %v298, %v304
    %v308 = vrot.slane %v279, 1
    %v310 = vmul.f32 %v303, %v308
    %v311 = vrot.slane %v279, 7
    %v313 = vmul.f32 %v306, %v311
    %v315 = vrot.slane %v313, 1
    %v317 = vsub.f32 %v310, %v315
    %v318 = vrot.slane %v279, 6
    %v320 = vmul.f32 %v306, %v318
    %v321 = vrot.slane %v279, 2
    %v323 = vmul.f32 %v299, %v321
    %v325 = vrot.slane %v323, 6
    %v327 = vsub.f32 %v320, %v325
    %v328 = vmul.f32 %v299, %v308
    %v329 = vmul.f32 %v303, %v311
    %v331 = vrot.slane %v329, 1
    %v333 = vsub.f32 %v328, %v331
    %v334 = vmul.f32 %v317, %v317
    %v335 = vmul.f32 %v327, %v327
    %v337 = vrot.slane %v335, 1
    %v339 = vadd.f32 %v334, %v337
    %v340 = vmul.f32 %v333, %v333
    %v342 = vrot.slane %v340, 7
    %v344 = vadd.f32 %v339, %v342
    %v345 = vrsqrt.pop %v344
    %v346 = vmul.f32 %v344, %v345
    %vm347 = vcmp.eq.f32.partialorder %v344, inf
    %v348 = vsel %vm347, %v344, %v346
    %vm349 = vcmp.eq.f32.partialorder %v344, 0.0
    %v350 = vand.u32 %v344, 2147483648
    %v351 = vsel %vm349, %v350, %v348
    %v352 = vadd.f32 %v351, 1e-06
    %v353 = vrcp.pop %v352
    %v354 = vmul.f32 1.0, %v353
    %v355 = vadd.f32 %v327, 1e-06
    %v356 = vmul.f32 %v317, %v354
    %v358 = vrot.slane %v354, 7
    %v360 = vmul.f32 %v355, %v358
    %v361 = vrot.slane %v354, 1
    %v363 = vmul.f32 %v333, %v361
    %v364 = vmul.f32 %v360, %v306
    %v366 = vrot.slane %v303, 1
    %v368 = vmul.f32 %v363, %v366
    %v370 = vrot.slane %v368, 6
    %v372 = vsub.f32 %v364, %v370
    %v373 = vmul.f32 %v363, %v299
    %v375 = vrot.slane %v306, 1
    %v377 = vmul.f32 %v356, %v375
    %v379 = vrot.slane %v377, 1
    %v381 = vsub.f32 %v373, %v379
    %v382 = vmul.f32 %v356, %v303
    %v384 = vrot.slane %v299, 6
    %v386 = vmul.f32 %v360, %v384
    %v388 = vrot.slane %v386, 1
    %v390 = vsub.f32 %v382, %v388
    %v391 = vmul.f32 %v372, %v372
    %v392 = vmul.f32 %v381, %v381
    %v394 = vrot.slane %v392, 6
    %v396 = vadd.f32 %v391, %v394
    %v397 = vmul.f32 %v390, %v390
    %v399 = vrot.slane %v397, 7
    %v401 = vadd.f32 %v396, %v399
    %v402 = vrsqrt.pop %v401
    %v403 = vmul.f32 %v401, %v402
    %vm404 = vcmp.eq.f32.partialorder %v401, inf
    %v405 = vsel %vm404, %v401, %v403
    %vm406 = vcmp.eq.f32.partialorder %v401, 0.0
    %v407 = vand.u32 %v401, 2147483648
    %v408 = vsel %vm406, %v407, %v405
    %v409 = vadd.f32 %v408, 1e-06
    %v410 = vrcp.pop %v409
    %v411 = vmul.f32 1.0, %v410
    %v412 = vadd.f32 %v372, 1e-06
    %v413 = vmul.f32 %v412, %v411
    %v415 = vrot.slane %v411, 2
    %v417 = vmul.f32 %v381, %v415
    %v418 = vrot.slane %v411, 1
    %v420 = vmul.f32 %v390, %v418
    %v422 = vrot.slane %v413, 7
    %v425 = vrot.slane %v417, 4
    %v428 = vrot.slane %v420, 4
    %v431 = vrot.slane %v356, 3
    %v434 = vrot.slane %v360, 3
    %v436 = vrot.slane %v299, 7
    %v438 = vrot.slane %v303, 7
    %v440 = vrot.slane %v306, 7
    %vm442 = vcmask 1042432
    %v443 = vsel %vm442, %v115, %v422
    %vm444 = vcmask 1043456
    %v445 = vsel %vm444, %v443, %v425
    %vm446 = vcmask 1044480
    %v447 = vsel %vm446, %v445, %v428
    %vm448 = vcmask 1045504
    %v449 = vsel %vm448, %v447, %v431
    %vm450 = vcmask 1046528
    %v451 = vsel %vm450, %v449, %v434
    %vm452 = vcmask 1040384
    %v453 = vsel %vm452, %v363, %v436
    %vm454 = vcmask 1041408
    %v455 = vsel %vm454, %v453, %v438
    %v456 = vsel %vm442, %v455, %v440
    %v458 = vlaneseq
    %v459 = vshrl.u32 %v458, 7
    %v460 = vsub.s32 0, %v459
    %v461 = vrot.slane %v33, %v460
    %v463 = vmul.f32 %v451, %v461
    %v464 = vmul.f32 %v456, %v461
    %s465 = smul.u32 %s18, 16
    %s466 = scalar_lea.vmem %s3, %s465
    %vm467 = vcmask 64512
    %468 = vst.msk [vmem:[%s466] sm:$0xff] %vm467, %v463
    %vm469 = vcmask 60416
    %470 = vst.msk [vmem:[%s466 + $0x8] sm:$0xf] %vm469, %v464
  $region18: #{tpu_custom_call.1} parent=0 // loop_footer
    %s22 = sadd.s32 1, %s18
  $region19: #{tpu_custom_call.1} parent=0 // loop_footer_branch
    %17 = sbr.rel target = $region15
  $region20: #{tpu_custom_call.1} parent=0 // loop_exit
    _
  // Predicated region
  $region21: #{tpu_custom_call.1} parent=0 // pred_check
    _
  $region22: #{tpu_custom_call.1} parent=0 // pred_check_branch
    %472 = sbr.rel (0) target = $region24
  $region23: #{tpu_custom_call.1} parent=0 // pred_region
    _
  $region24: #{tpu_custom_call.1} parent=0 // pred_fallthru
    _
  // Predicated region
  $region25: #{tpu_custom_call.1} parent=0 // pred_check
    _
  $region26: #{tpu_custom_call.1} parent=0 // pred_check_branch
    %474 = sbr.rel (0) target = $region28
  $region27: #{tpu_custom_call.1} parent=0 // pred_region
    _
  $region28: #{tpu_custom_call.1} parent=0 // pred_fallthru
    _

</llo_original>
